<compile_context>
chip_gen: v7x
topology: tpu7x:2x2x1
jax: 0.10.0
libtpu: 0.0.40
codegen_flags: <defaults>
</compile_context>

<pallas_src>
import functools

import jax
import jax.numpy as jnp
from jax.experimental import pallas as pl
from jax.experimental.pallas import tpu as pltpu


def _round_up(x, m):
    return (x + m - 1) // m * m


def _cdiv(a, b):
    return -(-a // b)


def _vmem_capacity_bytes():
    try:
        info = pltpu.get_tpu_info()
        cap = getattr(info, "vmem_capacity_bytes", None)
        if cap:
            return int(cap)
    except Exception:
        pass
    return 128 << 20  # conservative default (v5e/v6e class)


def _vmem_plan():
    """Returns (usable_vmem_limit_bytes, two_tensorcores_heuristic)."""
    cap = _vmem_capacity_bytes()
    if cap <= (64 << 20) + (1 << 20):
        # v7x-class: 64 MiB per TensorCore, 2 TCs per chip. Leave Mosaic headroom.
        limit = min(cap - (12 << 20), 52 << 20)
        two_cores = True
    else:
        # v5e/v6e-class: 128 MiB VMEM, single TensorCore.
        limit = min(int(cap * 0.82), 110 << 20)
        two_cores = False
    return max(limit, 24 << 20), two_cores


def _vmem_bytes(tb, tf, pd_model, x_itm, w_itm, out_itm, use_scratch):
    b = 2 * tb * pd_model * x_itm                       # x tile (double-buffered)
    b += 2 * (pd_model * tf + tf * pd_model) * w_itm    # w1/w2 slabs (double-buffered)
    b += 2 * (tf + pd_model) * 4                        # biases
    b += 2 * tb * pd_model * out_itm                    # output tile (double-buffered)
    if use_scratch:
        b += tb * pd_model * 4                          # f32 accumulator scratch
    b += tb * tf * (4 + w_itm)                          # fc1 intermediate + operand cast
    return int(b * 1.1)                                 # headroom for epilogue temps


def _batch_tilings(B, two_cores):
    """Candidate (n_batch_tiles, tb, padded_B) with minimal padding, tb descending."""
    out, seen = [], set()
    for bb in (1024, 768, 512, 384, 256, 192, 128, 96, 64, 48, 32, 16, 8):
        n_bt = max(1, _cdiv(B, bb))
        if two_cores and B >= 16:
            n_bt = max(n_bt, 2)          # keep both TensorCores busy (megacore)
        tb = _round_up(_cdiv(B, n_bt), 8)
        pb = n_bt * tb
        if tb not in seen:
            seen.add(tb)
            out.append((n_bt, tb, pb))
    return out


def _choose_tiles(B, d_ff, pd_model, x_itm, w_itm, out_itm, use_scratch,
                  vmem_limit, two_cores):
    batch_opts = _batch_tilings(B, two_cores)
    full = _round_up(d_ff, 128)

    def fits(tb, tf):
        return _vmem_bytes(tb, tf, pd_model, x_itm, w_itm, out_itm,
                           use_scratch) <= vmem_limit

    # Phase 1: fully VMEM-resident weights (tf == d_ff) with the largest batch tile.
    for n_bt, tb, pb in batch_opts:
        if fits(tb, full):
            return n_bt, tb, pb, full, full
    # Phase 2: stream d_ff slabs; maximize batch tile first (AI ~ tb), then slab.
    for n_bt, tb, pb in batch_opts:
        for tf in (2048, 1024, 512):
            if tf < full and fits(tb, tf):
                return n_bt, tb, pb, tf, _round_up(d_ff, tf)
    # Phase 3: last resort — smallest batch tile, small slab.
    n_bt, tb, pb = batch_opts[-1]
    for tf in (256, 128):
        if tf < full and fits(tb, tf):
            return n_bt, tb, pb, tf, _round_up(d_ff, tf)
    tf = min(full, 128)
    return n_bt, tb, pb, tf, _round_up(d_ff, tf)


def _pad2(a, rows, cols):
    r, c = a.shape
    if r == rows and c == cols:
        return a
    return jnp.pad(a, ((0, rows - r), (0, cols - c)))


def _ffn_kernel(x_ref, w1_ref, b1_ref, w2_ref, b2_ref, o_ref, *scratch,
                apply_softmax, out_cols):
    # If the output is f32 we accumulate straight into o_ref (no scratch copy).
    acc_ref = scratch[0] if scratch else o_ref
    j = pl.program_id(1)

    @pl.when(j == 0)
    def _():
        acc_ref[...] = jnp.zeros_like(acc_ref)

    # fc1 slab: [TB, d_model] @ [d_model, TF] -> f32, + bias, ReLU.
    h = jnp.dot(x_ref[...], w1_ref[...], preferred_element_type=jnp.float32)
    h = jnp.maximum(h + b1_ref[...], 0.0)

    # TODO(synk): dropout is identity here (inference semantics); training-mode
    # dropout would use pltpu.prng_seed + pltpu.prng_random_bits for the mask.

    # fc2 partial product over this d_ff slab, accumulated in f32.
    acc_ref[...] += jnp.dot(h.astype(w2_ref.dtype), w2_ref[...],
                            preferred_element_type=jnp.float32)

    @pl.when(j == pl.num_programs(1) - 1)
    def _():
        y = acc_ref[...] + b2_ref[...]
        if apply_softmax:
            if out_cols < y.shape[-1]:
                col = jax.lax.broadcasted_iota(jnp.int32, y.shape, 1)
                y = jnp.where(col < out_cols, y, -jnp.inf)
            m = jnp.max(y, axis=-1, keepdims=True)
            e = jnp.exp(y - m)
            denom = jnp.sum(e, axis=-1, keepdims=True)
            y = e / denom  # exact normalize: rows sum to 1
        o_ref[...] = y.astype(o_ref.dtype)


def feedforward(x, w1, b1, w2, b2, apply_softmax=False,
                compute_dtype=jnp.bfloat16):
    """x: [B, d_model]; w1: [d_model, d_ff] (= fc1.weight.T); b1: [d_ff];
    w2: [d_ff, d_model] (= fc2.weight.T); b2: [d_model] -> [B, d_model]."""
    B, d_model = x.shape
    d_ff = w1.shape[1]
    assert w1.shape == (d_model, d_ff) and w2.shape == (d_ff, d_model)

    out_dtype = x.dtype
    # bf16 matmul operands (higher MXU rate, half the weight DMA bytes);
    # accumulation and the bias/ReLU/softmax epilogue stay in f32.
    if compute_dtype is not None:
        x = x.astype(compute_dtype)
        w1 = w1.astype(compute_dtype)
        w2 = w2.astype(compute_dtype)

    x_itm = jnp.dtype(x.dtype).itemsize
    w_itm = jnp.dtype(w1.dtype).itemsize
    out_itm = jnp.dtype(out_dtype).itemsize
    use_scratch = jnp.dtype(out_dtype) != jnp.dtype(jnp.float32)

    pd_model = _round_up(d_model, 128)

    vmem_limit, two_cores = _vmem_plan()
    n_bt, tb, pb, tf, pf = _choose_tiles(
        B, d_ff, pd_model, x_itm, w_itm, out_itm, use_scratch,
        vmem_limit, two_cores)

    # Zero-pad everything to the tiled shapes (padded d_ff columns of w1 / rows
    # of w2 are zero, so they contribute nothing).
    x = _pad2(x, pb, pd_model)
    w1 = _pad2(w1, pd_model, pf)
    w2 = _pad2(w2, pf, pd_model)
    b1 = _pad2(jnp.asarray(b1, jnp.float32).reshape(1, -1), 1, pf)
    b2 = _pad2(jnp.asarray(b2, jnp.float32).reshape(1, -1), 1, pd_model)

    grid = (n_bt, pf // tf)
    kernel = functools.partial(_ffn_kernel, apply_softmax=apply_softmax,
                               out_cols=d_model)
    scratch_shapes = ([pltpu.VMEM((tb, pd_model), jnp.float32)]
                      if use_scratch else [])

    # Cost estimate: weight traffic is re-streamed per batch tile when tf < pf.
    weight_passes = n_bt if pf > tf else 1
    flops = 4 * pb * pd_model * pf
    bytes_accessed = (pb * pd_model * (x_itm + out_itm)
                      + weight_passes * 2 * pd_model * pf * w_itm
                      + weight_passes * (pf + pd_model) * 4)
    transcendentals = pb * pd_model if apply_softmax else 0

    out = pl.pallas_call(
        kernel,
        out_shape=jax.ShapeDtypeStruct((pb, pd_model), out_dtype),
        grid_spec=pltpu.PrefetchScalarGridSpec(
            num_scalar_prefetch=0,
            grid=grid,
            in_specs=[
                pl.BlockSpec((tb, pd_model), lambda i, j: (i, 0)),   # x
                pl.BlockSpec((pd_model, tf), lambda i, j: (0, j)),   # w1 slab
                pl.BlockSpec((1, tf), lambda i, j: (0, j)),          # b1 slab
                pl.BlockSpec((tf, pd_model), lambda i, j: (j, 0)),   # w2 slab
                pl.BlockSpec((1, pd_model), lambda i, j: (0, 0)),    # b2 (resident)
            ],
            out_specs=pl.BlockSpec((tb, pd_model), lambda i, j: (i, 0)),
            scratch_shapes=scratch_shapes,
        ),
        compiler_params=pltpu.CompilerParams(
            dimension_semantics=("parallel", "arbitrary"),
            vmem_limit_bytes=int(vmem_limit),
        ),
        cost_estimate=pl.CostEstimate(
            flops=flops,
            transcendentals=transcendentals,
            bytes_accessed=bytes_accessed),
    )(x, w1, b1, w2, b2)

    return out[:B, :d_model]


def _ref_feedforward(x, w1, b1, w2, b2, apply_softmax=False):
    h = jnp.maximum(x @ w1 + jnp.asarray(b1, jnp.float32).reshape(1, -1), 0.0)
    y = h @ w2 + jnp.asarray(b2, jnp.float32).reshape(1, -1)
    if apply_softmax:
        y = jax.nn.softmax(y, axis=1)
    return y


if __name__ == "__main__":
    key = jax.random.PRNGKey(0)
    kx, k1, k2, k3, k4 = jax.random.split(key, 5)

    # Case 1: aligned small shapes, f32 operands (tight tolerance).
    B, d_model, d_ff = 8, 128, 256
    x = jax.random.normal(kx, (B, d_model), dtype=jnp.float32)
    w1 = jax.random.normal(k1, (d_model, d_ff), dtype=jnp.float32) * 0.05
    b1 = jax.random.normal(k2, (d_ff,), dtype=jnp.float32) * 0.05
    w2 = jax.random.normal(k3, (d_ff, d_model), dtype=jnp.float32) * 0.05
    b2 = jax.random.normal(k4, (d_model,), dtype=jnp.float32) * 0.05

    out = jax.block_until_ready(
        feedforward(x, w1, b1, w2, b2, apply_softmax=False, compute_dtype=None))
    ref = _ref_feedforward(x, w1, b1, w2, b2, False)
    assert jnp.allclose(out, ref, atol=2e-4, rtol=2e-4), "mismatch (f32, no softmax)"

    out_sm = jax.block_until_ready(
        feedforward(x, w1, b1, w2, b2, apply_softmax=True, compute_dtype=None))
    ref_sm = _ref_feedforward(x, w1, b1, w2, b2, True)
    assert jnp.allclose(out_sm, ref_sm, atol=1e-5, rtol=1e-4), "mismatch (f32, softmax)"

    # Case 2: unaligned dims (exercises d_model/d_ff zero-padding + masked softmax).
    B3, dm3, df3 = 4, 96, 80
    x3 = jax.random.normal(kx, (B3, dm3), dtype=jnp.float32)
    w13 = jax.random.normal(k1, (dm3, df3), dtype=jnp.float32) * 0.05
    b13 = jax.random.normal(k2, (df3,), dtype=jnp.float32) * 0.05
    w23 = jax.random.normal(k3, (df3, dm3), dtype=jnp.float32) * 0.05
    b23 = jax.random.normal(k4, (dm3,), dtype=jnp.float32) * 0.05
    out3 = jax.block_until_ready(
        feedforward(x3, w13, b13, w23, b23, apply_softmax=True, compute_dtype=None))
    ref3 = _ref_feedforward(x3, w13, b13, w23, b23, True)
    assert jnp.allclose(out3, ref3, atol=1e-5, rtol=1e-4), "mismatch (padded, softmax)"
    assert jnp.allclose(jnp.sum(out3, axis=1), 1.0, atol=1e-5), "softmax rows != 1"

    # Case 3: bf16 operands, bf16 output (exercises the scratch-accumulator path
    # and a multi-tile batch grid on 2-core chips).
    B2 = 96
    x2 = jax.random.normal(kx, (B2, d_model), dtype=jnp.bfloat16)
    out2 = jax.block_until_ready(
        feedforward(x2, w1, b1, w2, b2, apply_softmax=False))  # bf16 compute default
    ref2 = _ref_feedforward(x2.astype(jnp.float32), w1, b1, w2, b2, False)
    assert jnp.allclose(out2.astype(jnp.float32), ref2, atol=3e-2, rtol=1e-1), \
        "mismatch (bf16)"

    print("KERNEL_OK")
</pallas_src>

<mosaic_0001>
module attributes {stable_mosaic.version = 11 : i64} {
  func.func @_ffn_kernel(%arg0: i32, %arg1: i32, %arg2: memref<8x128xf32, #tpu.memory_space<vmem>>, %arg3: memref<128x256xf32, #tpu.memory_space<vmem>>, %arg4: memref<1x256xf32, #tpu.memory_space<vmem>>, %arg5: memref<256x128xf32, #tpu.memory_space<vmem>>, %arg6: memref<1x128xf32, #tpu.memory_space<vmem>>, %arg7: memref<8x128xf32, #tpu.memory_space<vmem>>) attributes {dimension_semantics = [#tpu.dimension_semantics<parallel>, #tpu.dimension_semantics<arbitrary>], iteration_bounds = array<i64: 1, 1>, scalar_prefetch = 0 : i64, scratch_operands = 0 : i64, tpu.core_type = #tpu.core_type<tc>, window_params = [{transform_indices = @transform_0, window_bounds = array<i64: 8, 128>}, {transform_indices = @transform_1, window_bounds = array<i64: 128, 256>}, {transform_indices = @transform_2, window_bounds = array<i64: 1, 256>}, {transform_indices = @transform_3, window_bounds = array<i64: 256, 128>}, {pipeline_mode = #tpu.pipeline_mode<synchronous>, transform_indices = @transform_4, window_bounds = array<i64: 1, 128>}, {transform_indices = @transform_5, window_bounds = array<i64: 8, 128>}]} {
    %c0_i32 = arith.constant 0 : i32
    %0 = arith.cmpi eq, %arg1, %c0_i32 : i32
    %1 = arith.extui %0 : i1 to i32
    %c0_i32_0 = arith.constant 0 : i32
    %2 = arith.cmpi ne, %1, %c0_i32_0 : i32
    scf.if %2 {
      %cst_16 = arith.constant 0.000000e+00 : f32
      %19 = vector.broadcast %cst_16 : f32 to vector<8x128xf32>
      %c0_17 = arith.constant 0 : index
      %c0_18 = arith.constant 0 : index
      %20 = vector.load %arg7[%c0_17, %c0_18] : memref<8x128xf32, #tpu.memory_space<vmem>>, vector<8x128xf32>
      tpu.vector_store %arg7[%c0_17, %c0_18], %19 {strides = array<i32>} : memref<8x128xf32, #tpu.memory_space<vmem>>, vector<8x128xf32>,
    } else {
    }
    %c0 = arith.constant 0 : index
    %c0_1 = arith.constant 0 : index
    %3 = vector.load %arg2[%c0, %c0_1] : memref<8x128xf32, #tpu.memory_space<vmem>>, vector<8x128xf32>
    %c0_2 = arith.constant 0 : index
    %c0_3 = arith.constant 0 : index
    %4 = vector.load %arg3[%c0_2, %c0_3] : memref<128x256xf32, #tpu.memory_space<vmem>>, vector<128x256xf32>
    %cst = arith.constant dense<0.000000e+00> : vector<8x256xf32>
    %5 = tpu.matmul %3, %4, %cst {dimension_numbers = #tpu.dot_dimension_numbers<[1], [0], [0], [1], [0, 0, 1, 1], [], []>} : vector<8x128xf32>, vector<128x256xf32>, vector<8x256xf32> -> vector<8x256xf32>
    %c0_4 = arith.constant 0 : index
    %c0_5 = arith.constant 0 : index
    %6 = vector.load %arg4[%c0_4, %c0_5] : memref<1x256xf32, #tpu.memory_space<vmem>>, vector<1x256xf32>
    %7 = vector.broadcast %6 : vector<1x256xf32> to vector<8x256xf32>
    %8 = arith.addf %5, %7 : vector<8x256xf32>
    %cst_6 = arith.constant 0.000000e+00 : f32
    %9 = vector.broadcast %cst_6 : f32 to vector<8x256xf32>
    %10 = arith.maximumf %8, %9 : vector<8x256xf32>
    %c0_7 = arith.constant 0 : index
    %c0_8 = arith.constant 0 : index
    %11 = vector.load %arg7[%c0_7, %c0_8] : memref<8x128xf32, #tpu.memory_space<vmem>>, vector<8x128xf32>
    %c0_9 = arith.constant 0 : index
    %c0_10 = arith.constant 0 : index
    %12 = vector.load %arg5[%c0_9, %c0_10] : memref<256x128xf32, #tpu.memory_space<vmem>>, vector<256x128xf32>
    %cst_11 = arith.constant dense<0.000000e+00> : vector<8x128xf32>
    %13 = tpu.matmul %10, %12, %cst_11 {dimension_numbers = #tpu.dot_dimension_numbers<[1], [0], [0], [1], [0, 0, 1, 1], [], []>} : vector<8x256xf32>, vector<256x128xf32>, vector<8x128xf32> -> vector<8x128xf32>
    %14 = arith.addf %11, %13 : vector<8x128xf32>
    %c0_12 = arith.constant 0 : index
    %c0_13 = arith.constant 0 : index
    %15 = vector.load %arg7[%c0_12, %c0_13] : memref<8x128xf32, #tpu.memory_space<vmem>>, vector<8x128xf32>
    tpu.vector_store %arg7[%c0_12, %c0_13], %14 {strides = array<i32>} : memref<8x128xf32, #tpu.memory_space<vmem>>, vector<8x128xf32>,
    %c0_i32_14 = arith.constant 0 : i32
    %16 = arith.cmpi eq, %arg1, %c0_i32_14 : i32
    %17 = arith.extui %16 : i1 to i32
    %c0_i32_15 = arith.constant 0 : i32
    %18 = arith.cmpi ne, %17, %c0_i32_15 : i32
    scf.if %18 {
      %c0_16 = arith.constant 0 : index
      %c0_17 = arith.constant 0 : index
      %19 = vector.load %arg7[%c0_16, %c0_17] : memref<8x128xf32, #tpu.memory_space<vmem>>, vector<8x128xf32>
      %c0_18 = arith.constant 0 : index
      %c0_19 = arith.constant 0 : index
      %20 = vector.load %arg6[%c0_18, %c0_19] : memref<1x128xf32, #tpu.memory_space<vmem>>, vector<1x128xf32>
      %21 = vector.broadcast %20 : vector<1x128xf32> to vector<8x128xf32>
      %22 = arith.addf %19, %21 : vector<8x128xf32>
      %c0_20 = arith.constant 0 : index
      %c0_21 = arith.constant 0 : index
      %23 = vector.load %arg7[%c0_20, %c0_21] : memref<8x128xf32, #tpu.memory_space<vmem>>, vector<8x128xf32>
      tpu.vector_store %arg7[%c0_20, %c0_21], %22 {strides = array<i32>} : memref<8x128xf32, #tpu.memory_space<vmem>>, vector<8x128xf32>,
    } else {
    }
    return
  }
  func.func @transform_0(%arg0: i32, %arg1: i32) -> (i32, i32) {
    %c0_i32 = arith.constant 0 : i32
    %c0_i32_0 = arith.constant 0 : i32
    return %arg0, %c0_i32 : i32, i32
  }
  func.func @transform_1(%arg0: i32, %arg1: i32) -> (i32, i32) {
    %c0_i32 = arith.constant 0 : i32
    %c0_i32_0 = arith.constant 0 : i32
    return %c0_i32, %arg1 : i32, i32
  }
  func.func @transform_2(%arg0: i32, %arg1: i32) -> (i32, i32) {
    %c0_i32 = arith.constant 0 : i32
    %c0_i32_0 = arith.constant 0 : i32
    return %c0_i32, %arg1 : i32, i32
  }
  func.func @transform_3(%arg0: i32, %arg1: i32) -> (i32, i32) {
    %c0_i32 = arith.constant 0 : i32
    %c0_i32_0 = arith.constant 0 : i32
    return %arg1, %c0_i32 : i32, i32
  }
  func.func @transform_4(%arg0: i32, %arg1: i32) -> (i32, i32) {
    %c0_i32 = arith.constant 0 : i32
    %c0_i32_0 = arith.constant 0 : i32
    %c0_i32_1 = arith.constant 0 : i32
    return %c0_i32, %c0_i32_0 : i32, i32
  }
  func.func @transform_5(%arg0: i32, %arg1: i32) -> (i32, i32) {
    %c0_i32 = arith.constant 0 : i32
    %c0_i32_0 = arith.constant 0 : i32
    return %arg0, %c0_i32 : i32, i32
  }
}

</mosaic_0001>

<llo_original>
// kernel: tpu_custom_call.1
$region0: #{tpu_custom_call.1}
  #allocation0 [shape = 'u32[]', space=smem, size = 0x4, offset = 0x4, fixed_abs, tag = 'smem constant byte address 0x4 - core index']
  #allocation1 [shape = 'u32[144,128]{1,0:T(1,128)}', space=vmem, size = 0x12000, scoped, tag = 'internal scratch']
  %s0 = inlined_call_operand.hbm [shape: f32[8,128], index: 0, kind: input, shape index: {}]
  %s1 = inlined_call_operand.hbm [shape: f32[128,256], index: 1, kind: input, shape index: {}]
  %s2 = inlined_call_operand.hbm [shape: f32[1,256], index: 2, kind: input, shape index: {}]
  %s3 = inlined_call_operand.hbm [shape: f32[256,128], index: 3, kind: input, shape index: {}]
  %s4 = inlined_call_operand.hbm [shape: f32[1,128], index: 4, kind: input, shape index: {}]
  %s5 = inlined_call_operand.hbm [shape: f32[8,128], index: 5, kind: output, shape index: {}]
  %s6 = sld [smem:[#allocation0]]
  $region58: #{tpu_custom_call.1} parent=0
    _
  %s8 = ssub.s32 1, %s6
  %s9 = scalar_select 0, %s8, %s6
  $region1: #{tpu_custom_call.1} parent=0
    #allocation2 [shape = 'u8[4096]{0}', space=vmem, size = 0x1000, scoped, tag = 'input window, operand 0, single buffered']
    #allocation3 [shape = 's32[1]{0}', space=sflag, size = 0x4, scoped, tag = 'scoped memory for tpu_custom_call.1']
    #allocation4 [shape = 's32[1]{0}', space=sflag, size = 0x4, scoped, tag = 'scoped memory for tpu_custom_call.1']
    #allocation5 [shape = 'u8[131072]{0}', space=vmem, size = 0x20000, scoped, tag = 'input window, operand 1, single buffered']
    #allocation6 [shape = 's32[1]{0}', space=sflag, size = 0x4, scoped, tag = 'scoped memory for tpu_custom_call.1']
    #allocation7 [shape = 'u8[1024]{0}', space=vmem, size = 0x400, scoped, tag = 'input window, operand 2, single buffered']
    #allocation8 [shape = 'u8[131072]{0}', space=vmem, size = 0x20000, scoped, tag = 'input window, operand 3, single buffered']
    #allocation9 [shape = 's32[1]{0}', space=sflag, size = 0x4, scoped, tag = 'scoped memory for tpu_custom_call.1']
    #allocation10 [shape = 'u8[512]{0}', space=vmem, size = 0x400, scoped, tag = 'input window, operand 4, single buffered']
    #allocation11 [shape = 'u8[4096]{0}', space=vmem, size = 0x1000, scoped, tag = 'output window, operand 0, single buffered']
    %10 = vsyncpa [#allocation3], 0
    %11 = vsyncpa [#allocation6], 0
    %12 = vsyncpa [#allocation9], 0
    %13 = vsyncpa [#allocation4], 0
    // Predicated region
    $region2: #{tpu_custom_call.1} parent=1 // pred_check
      _
    $region3: #{tpu_custom_call.1} parent=1 // pred_check_branch
      %15 = sbr.rel (0) target = $region5
    $region4: #{tpu_custom_call.1} parent=1 // pred_region
      %s17 = ssub.s32 128, 128
      %18 = vsyncadd [#allocation3], %s17
      %s20 = sshll.u32 [#allocation2], 4
      %s21 = int_to_ptr.vmem [resolvable:$true] %s20
      %23 = dma.hbm_to_vmem [thread:$0]  %s0, 128, %s21, [#allocation3]
    $region5: #{tpu_custom_call.1} parent=1 // pred_fallthru
      _
    // Predicated region
    $region6: #{tpu_custom_call.1} parent=1 // pred_check
      _
    $region7: #{tpu_custom_call.1} parent=1 // pred_check_branch
      %25 = sbr.rel (0) target = $region9
    $region8: #{tpu_custom_call.1} parent=1 // pred_region
      %s27 = ssub.s32 4096, 4096
      %28 = vsyncadd [#allocation6], %s27
      %s29 = sshll.u32 [#allocation5], 4
      %s30 = int_to_ptr.vmem [resolvable:$true] %s29
      %35 = dma.hbm_to_vmem [thread:$0]  %s1, 4096, %s30, [#allocation6], 256, 256, 16
    $region9: #{tpu_custom_call.1} parent=1 // pred_fallthru
      _
    // Predicated region
    $region10: #{tpu_custom_call.1} parent=1 // pred_check
      _
    $region11: #{tpu_custom_call.1} parent=1 // pred_check_branch
      %37 = sbr.rel (0) target = $region13
    $region12: #{tpu_custom_call.1} parent=1 // pred_region
      %s39 = ssub.s32 32, 32
      %40 = vsyncadd [#allocation6], %s39
      %s42 = sshll.u32 [#allocation7], 4
      %s43 = int_to_ptr.vmem [resolvable:$true] %s42
      %45 = dma.hbm_to_vmem [thread:$0]  %s2, 32, %s43, [#allocation6]
    $region13: #{tpu_custom_call.1} parent=1 // pred_fallthru
      _
    // Predicated region
    $region14: #{tpu_custom_call.1} parent=1 // pred_check
      _
    $region15: #{tpu_custom_call.1} parent=1 // pred_check_branch
      %47 = sbr.rel (0) target = $region17
    $region16: #{tpu_custom_call.1} parent=1 // pred_region
      %s49 = ssub.s32 4096, 4096
      %50 = vsyncadd [#allocation9], %s49
      %s51 = sshll.u32 [#allocation8], 4
      %s52 = int_to_ptr.vmem [resolvable:$true] %s51
      %57 = dma.hbm_to_vmem [thread:$0]  %s3, 4096, %s52, [#allocation9], 128, 128, 8
    $region17: #{tpu_custom_call.1} parent=1 // pred_fallthru
      _
    // Predicated region
    $region18: #{tpu_custom_call.1} parent=1 // pred_check
      _
    $region19: #{tpu_custom_call.1} parent=1 // pred_check_branch
      %59 = sbr.rel (0) target = $region21
    $region20: #{tpu_custom_call.1} parent=1 // pred_region
      %s61 = ssub.s32 16, 16
      %62 = vsyncadd [#allocation9], %s61
      %s64 = sshll.u32 [#allocation10], 4
      %s65 = int_to_ptr.vmem [resolvable:$true] %s64
      %67 = dma.hbm_to_vmem [thread:$0]  %s4, 16, %s65, [#allocation9]
    $region21: #{tpu_custom_call.1} parent=1 // pred_fallthru
      _
    // Predicated region
    $region22: #{tpu_custom_call.1} parent=1 // pred_check
      _
    $region23: #{tpu_custom_call.1} parent=1 // pred_check_branch
      %69 = sbr.rel (0) target = $region25
    $region24: #{tpu_custom_call.1} parent=1 // pred_region
      %70 = dma.done [#allocation3], 128
    $region25: #{tpu_custom_call.1} parent=1 // pred_fallthru
      _
    // Predicated region
    $region26: #{tpu_custom_call.1} parent=1 // pred_check
      _
    $region27: #{tpu_custom_call.1} parent=1 // pred_check_branch
      %72 = sbr.rel (0) target = $region29
    $region28: #{tpu_custom_call.1} parent=1 // pred_region
      %73 = dma.done [#allocation6], 4096
    $region29: #{tpu_custom_call.1} parent=1 // pred_fallthru
      _
    // Predicated region
    $region30: #{tpu_custom_call.1} parent=1 // pred_check
      _
    $region31: #{tpu_custom_call.1} parent=1 // pred_check_branch
      %75 = sbr.rel (0) target = $region33
    $region32: #{tpu_custom_call.1} parent=1 // pred_region
      %76 = dma.done [#allocation6], 32
    $region33: #{tpu_custom_call.1} parent=1 // pred_fallthru
      _
    // Predicated region
    $region34: #{tpu_custom_call.1} parent=1 // pred_check
      _
    $region35: #{tpu_custom_call.1} parent=1 // pred_check_branch
      %78 = sbr.rel (0) target = $region37
    $region36: #{tpu_custom_call.1} parent=1 // pred_region
      %79 = dma.done [#allocation9], 4096
    $region37: #{tpu_custom_call.1} parent=1 // pred_fallthru
      _
    // Predicated region
    $region38: #{tpu_custom_call.1} parent=1 // pred_check
      _
    $region39: #{tpu_custom_call.1} parent=1 // pred_check_branch
      %81 = sbr.rel (0) target = $region41
    $region40: #{tpu_custom_call.1} parent=1 // pred_region
      %82 = dma.done [#allocation9], 16
    $region41: #{tpu_custom_call.1} parent=1 // pred_fallthru
      _
    %p83 = scmp.eq.s32.totalorder 0, 0
    // Predicated region
    $region42: #{tpu_custom_call.1} parent=1 // pred_check
      %p84 = pneg %p83
    $region43: #{tpu_custom_call.1} parent=1 // pred_check_branch
      %86 = sbr.rel (%p84) target = $region45
    $region44: #{tpu_custom_call.1} parent=1 // pred_region
      %87 = vst [vmem:[#allocation11] sm:$0xff] 0.0
    $region45: #{tpu_custom_call.1} parent=1 // pred_fallthru
      _
    %v88 = vld [vmem:[#allocation2] sm:$0xff]
    %v89 = vld [vmem:[#allocation5] sm:$0xff]
    %v90 = vld [vmem:[#allocation5 + $0x8] sm:$0xff]
    %v91 = vld [vmem:[#allocation5 + $0x10] sm:$0xff]
    %v92 = vld [vmem:[#allocation5 + $0x18] sm:$0xff]
    %v93 = vld [vmem:[#allocation5 + $0x20] sm:$0xff]
    %v94 = vld [vmem:[#allocation5 + $0x28] sm:$0xff]
    %v95 = vld [vmem:[#allocation5 + $0x30] sm:$0xff]
    %v96 = vld [vmem:[#allocation5 + $0x38] sm:$0xff]
    %v97 = vld [vmem:[#allocation5 + $0x40] sm:$0xff]
    %v98 = vld [vmem:[#allocation5 + $0x48] sm:$0xff]
    %v99 = vld [vmem:[#allocation5 + $0x50] sm:$0xff]
    %v100 = vld [vmem:[#allocation5 + $0x58] sm:$0xff]
    %v101 = vld [vmem:[#allocation5 + $0x60] sm:$0xff]
    %v102 = vld [vmem:[#allocation5 + $0x68] sm:$0xff]
    %v103 = vld [vmem:[#allocation5 + $0x70] sm:$0xff]
    %v104 = vld [vmem:[#allocation5 + $0x78] sm:$0xff]
    %v105 = vld [vmem:[#allocation5 + $0x80] sm:$0xff]
    %v106 = vld [vmem:[#allocation5 + $0x88] sm:$0xff]
    %v107 = vld [vmem:[#allocation5 + $0x90] sm:$0xff]
    %v108 = vld [vmem:[#allocation5 + $0x98] sm:$0xff]
    %v109 = vld [vmem:[#allocation5 + $0xa0] sm:$0xff]
    %v110 = vld [vmem:[#allocation5 + $0xa8] sm:$0xff]
    %v111 = vld [vmem:[#allocation5 + $0xb0] sm:$0xff]
    %v112 = vld [vmem:[#allocation5 + $0xb8] sm:$0xff]
    %v113 = vld [vmem:[#allocation5 + $0xc0] sm:$0xff]
    %v114 = vld [vmem:[#allocation5 + $0xc8] sm:$0xff]
    %v115 = vld [vmem:[#allocation5 + $0xd0] sm:$0xff]
    %v116 = vld [vmem:[#allocation5 + $0xd8] sm:$0xff]
    %v117 = vld [vmem:[#allocation5 + $0xe0] sm:$0xff]
    %v118 = vld [vmem:[#allocation5 + $0xe8] sm:$0xff]
    %v119 = vld [vmem:[#allocation5 + $0xf0] sm:$0xff]
    %v120 = vld [vmem:[#allocation5 + $0xf8] sm:$0xff]
    %v121 = vld [vmem:[#allocation7] sm:$0x3]
    %v123 = vlaneseq
    %v124 = vshrl.u32 %v123, 7
    %v125 = vsub.s32 0, %v124
    %v126 = vrot.slane %v121, %v125
    %v127 = vlaneseq
    %v128 = vshrl.u32 %v127, 7
    %v129 = vsub.s32 1, %v128
    %v130 = vrot.slane %v121, %v129
    %133 = vmatprep.subr.mxu0 %v90
    %134 = vmatpush1.msra.mxu0 %v89
    %135 = vmatprep.subr.mxu0 %v92
    %136 = vmatpush1.msra.mxu0 %v91
    %137 = vmatprep.subr.mxu0 %v94
    %138 = vmatpush1.msra.mxu0 %v93
    %139 = vmatprep.subr.mxu0 %v96
    %140 = vmatpush1.msra.mxu0 %v95
    %141 = vmatprep.subr.mxu0 %v98
    %142 = vmatpush1.msra.mxu0 %v97
    %143 = vmatprep.subr.mxu0 %v100
    %144 = vmatpush1.msra.mxu0 %v99
    %145 = vmatprep.subr.mxu0 %v102
    %146 = vmatpush1.msra.mxu0 %v101
    %147 = vmatprep.subr.mxu0 %v104
    %148 = vmatpush1.msra.mxu0 %v103
    %149 = vmatprep.subr.mxu0 %v106
    %150 = vmatpush1.msra.mxu0 %v105
    %151 = vmatprep.subr.mxu0 %v108
    %152 = vmatpush1.msra.mxu0 %v107
    %153 = vmatprep.subr.mxu0 %v110
    %154 = vmatpush1.msra.mxu0 %v109
    %155 = vmatprep.subr.mxu0 %v112
    %156 = vmatpush1.msra.mxu0 %v111
    %157 = vmatprep.subr.mxu0 %v114
    %158 = vmatpush1.msra.mxu0 %v113
    %159 = vmatprep.subr.mxu0 %v116
    %160 = vmatpush1.msra.mxu0 %v115
    %161 = vmatprep.subr.mxu0 %v118
    %162 = vmatpush1.msra.mxu0 %v117
    %163 = vmatprep.subr.mxu0 %v120
    %164 = vmatpush1.msra.mxu0 %v119
    %165 = vmatprep.subr.mxu0 0.0
    %166 = vmatpush1.msra.mxu0 0.0
    %167 = vmatprep.subr.mxu0 0.0
    %168 = vmatpush1.msra.mxu0 0.0
    %169 = vmatprep.subr.mxu0 0.0
    %170 = vmatpush1.msra.mxu0 0.0
    %171 = vmatprep.subr.mxu0 0.0
    %172 = vmatpush1.msra.mxu0 0.0
    %173 = vmatprep.subr.mxu0 0.0
    %174 = vmatpush1.msra.mxu0 0.0
    %175 = vmatprep.subr.mxu0 0.0
    %176 = vmatpush1.msra.mxu0 0.0
    %177 = vmatprep.subr.mxu0 0.0
    %178 = vmatpush1.msra.mxu0 0.0
    %179 = vmatprep.subr.mxu0 0.0
    %180 = vmatpush1.msra.mxu0 0.0
    %181 = vmatprep.subr.mxu0 0.0
    %182 = vmatpush1.msra.mxu0 0.0
    %183 = vmatprep.subr.mxu0 0.0
    %184 = vmatpush1.msra.mxu0 0.0
    %185 = vmatprep.subr.mxu0 0.0
    %186 = vmatpush1.msra.mxu0 0.0
    %187 = vmatprep.subr.mxu0 0.0
    %188 = vmatpush1.msra.mxu0 0.0
    %189 = vmatprep.subr.mxu0 0.0
    %190 = vmatpush1.msra.mxu0 0.0
    %191 = vmatprep.subr.mxu0 0.0
    %192 = vmatpush1.msra.mxu0 0.0
    %193 = vmatprep.subr.mxu0 0.0
    %194 = vmatpush1.msra.mxu0 0.0
    %195 = vmatprep.subr.mxu0 0.0
    %196 = vmatpush1.msra.mxu0 0.0
    %197 = vmatprep.mubr.f32.mxu0 0.0
    %198 = vmatmul.mubr.f32.gmra.mrb[0].mxu0 %v88
    %v199 = vpop.f32.mrb[0].mxu0
    %v200 = vadd.f32 %v126, %v199
    %v201 = vpop.f32.mrb[0].mxu0
    %v202 = vadd.f32 %v130, %v201
    %203 = vdwg.mxu0
    %v204 = vmax.f32 %v200, 0.0
    %v205 = vmax.f32 %v202, 0.0
    %v206 = vld [vmem:[#allocation11] sm:$0xff]
    %v207 = vld [vmem:[#allocation8] sm:$0xff]
    %v208 = vld [vmem:[#allocation8 + $0x8] sm:$0xff]
    %v209 = vld [vmem:[#allocation8 + $0x10] sm:$0xff]
    %v210 = vld [vmem:[#allocation8 + $0x18] sm:$0xff]
    %v211 = vld [vmem:[#allocation8 + $0x20] sm:$0xff]
    %v212 = vld [vmem:[#allocation8 + $0x28] sm:$0xff]
    %v213 = vld [vmem:[#allocation8 + $0x30] sm:$0xff]
    %v214 = vld [vmem:[#allocation8 + $0x38] sm:$0xff]
    %v215 = vld [vmem:[#allocation8 + $0x40] sm:$0xff]
    %v216 = vld [vmem:[#allocation8 + $0x48] sm:$0xff]
    %v217 = vld [vmem:[#allocation8 + $0x50] sm:$0xff]
    %v218 = vld [vmem:[#allocation8 + $0x58] sm:$0xff]
    %v219 = vld [vmem:[#allocation8 + $0x60] sm:$0xff]
    %v220 = vld [vmem:[#allocation8 + $0x68] sm:$0xff]
    %v221 = vld [vmem:[#allocation8 + $0x70] sm:$0xff]
    %v222 = vld [vmem:[#allocation8 + $0x78] sm:$0xff]
    %v223 = vld [vmem:[#allocation8 + $0x80] sm:$0xff]
    %v224 = vld [vmem:[#allocation8 + $0x88] sm:$0xff]
    %v225 = vld [vmem:[#allocation8 + $0x90] sm:$0xff]
    %v226 = vld [vmem:[#allocation8 + $0x98] sm:$0xff]
    %v227 = vld [vmem:[#allocation8 + $0xa0] sm:$0xff]
    %v228 = vld [vmem:[#allocation8 + $0xa8] sm:$0xff]
    %v229 = vld [vmem:[#allocation8 + $0xb0] sm:$0xff]
    %v230 = vld [vmem:[#allocation8 + $0xb8] sm:$0xff]
    %v231 = vld [vmem:[#allocation8 + $0xc0] sm:$0xff]
    %v232 = vld [vmem:[#allocation8 + $0xc8] sm:$0xff]
    %v233 = vld [vmem:[#allocation8 + $0xd0] sm:$0xff]
    %v234 = vld [vmem:[#allocation8 + $0xd8] sm:$0xff]
    %v235 = vld [vmem:[#allocation8 + $0xe0] sm:$0xff]
    %v236 = vld [vmem:[#allocation8 + $0xe8] sm:$0xff]
    %v237 = vld [vmem:[#allocation8 + $0xf0] sm:$0xff]
    %v238 = vld [vmem:[#allocation8 + $0xf8] sm:$0xff]
    %239 = vmatprep.subr.mxu0 0.0
    %240 = vmatpush1.msra.mxu0 %v207
    %241 = vmatprep.subr.mxu0 0.0
    %242 = vmatpush1.msra.mxu0 %v208
    %243 = vmatprep.subr.mxu0 0.0
    %244 = vmatpush1.msra.mxu0 %v209
    %245 = vmatprep.subr.mxu0 0.0
    %246 = vmatpush1.msra.mxu0 %v210
    %247 = vmatprep.subr.mxu0 0.0
    %248 = vmatpush1.msra.mxu0 %v211
    %249 = vmatprep.subr.mxu0 0.0
    %250 = vmatpush1.msra.mxu0 %v212
    %251 = vmatprep.subr.mxu0 0.0
    %252 = vmatpush1.msra.mxu0 %v213
    %253 = vmatprep.subr.mxu0 0.0
    %254 = vmatpush1.msra.mxu0 %v214
    %255 = vmatprep.subr.mxu0 0.0
    %256 = vmatpush1.msra.mxu0 %v215
    %257 = vmatprep.subr.mxu0 0.0
    %258 = vmatpush1.msra.mxu0 %v216
    %259 = vmatprep.subr.mxu0 0.0
    %260 = vmatpush1.msra.mxu0 %v217
    %261 = vmatprep.subr.mxu0 0.0
    %262 = vmatpush1.msra.mxu0 %v218
    %263 = vmatprep.subr.mxu0 0.0
    %264 = vmatpush1.msra.mxu0 %v219
    %265 = vmatprep.subr.mxu0 0.0
    %266 = vmatpush1.msra.mxu0 %v220
    %267 = vmatprep.subr.mxu0 0.0
    %268 = vmatpush1.msra.mxu0 %v221
    %269 = vmatprep.subr.mxu0 0.0
    %270 = vmatpush1.msra.mxu0 %v222
    %271 = vmatprep.subr.mxu0 0.0
    %272 = vmatpush1.msra.mxu0 %v223
    %273 = vmatprep.subr.mxu0 0.0
    %274 = vmatpush1.msra.mxu0 %v224
    %275 = vmatprep.subr.mxu0 0.0
    %276 = vmatpush1.msra.mxu0 %v225
    %277 = vmatprep.subr.mxu0 0.0
    %278 = vmatpush1.msra.mxu0 %v226
    %279 = vmatprep.subr.mxu0 0.0
    %280 = vmatpush1.msra.mxu0 %v227
    %281 = vmatprep.subr.mxu0 0.0
    %282 = vmatpush1.msra.mxu0 %v228
    %283 = vmatprep.subr.mxu0 0.0
    %284 = vmatpush1.msra.mxu0 %v229
    %285 = vmatprep.subr.mxu0 0.0
    %286 = vmatpush1.msra.mxu0 %v230
    %287 = vmatprep.subr.mxu0 0.0
    %288 = vmatpush1.msra.mxu0 %v231
    %289 = vmatprep.subr.mxu0 0.0
    %290 = vmatpush1.msra.mxu0 %v232
    %291 = vmatprep.subr.mxu0 0.0
    %292 = vmatpush1.msra.mxu0 %v233
    %293 = vmatprep.subr.mxu0 0.0
    %294 = vmatpush1.msra.mxu0 %v234
    %295 = vmatprep.subr.mxu0 0.0
    %296 = vmatpush1.msra.mxu0 %v235
    %297 = vmatprep.subr.mxu0 0.0
    %298 = vmatpush1.msra.mxu0 %v236
    %299 = vmatprep.subr.mxu0 0.0
    %300 = vmatpush1.msra.mxu0 %v237
    %301 = vmatprep.subr.mxu0 0.0
    %302 = vmatpush1.msra.mxu0 %v238
    %303 = vmatprep.mubr.f32.mxu0 %v205
    %304 = vmatmul.mubr.f32.gmra.mrb[0].mxu0 %v204
    %v305 = vpop.f32.mrb[0].mxu0
    %v306 = vadd.f32 0.0, %v305
    %v307 = vpop.f32.mrb[0].mxu0
    %308 = vdwg.mxu0
    %v309 = vadd.f32 %v206, %v306
    %310 = vst [vmem:[#allocation11] sm:$0xff] %v309
    // Predicated region
    $region46: #{tpu_custom_call.1} parent=1 // pred_check
      %p311 = pneg %p83
    $region47: #{tpu_custom_call.1} parent=1 // pred_check_branch
      %313 = sbr.rel (%p311) target = $region49
    $region48: #{tpu_custom_call.1} parent=1 // pred_region
      %v314 = vld [vmem:[#allocation11] sm:$0xff]
      %v315 = vld [vmem:[#allocation10] sm:$0x1]
      %v317 = vlaneseq
      %v318 = vshrl.u32 %v317, 7
      %v319 = vsub.s32 0, %v318
      %v320 = vrot.slane %v315, %v319
      %v322 = vadd.f32 %v314, %v320
      %323 = vst [vmem:[#allocation11] sm:$0xff] %v322
    $region49: #{tpu_custom_call.1} parent=1 // pred_fallthru
      _
    // Predicated region
    $region50: #{tpu_custom_call.1} parent=1 // pred_check
      _
    $region51: #{tpu_custom_call.1} parent=1 // pred_check_branch
      %325 = sbr.rel (0) target = $region53
    $region52: #{tpu_custom_call.1} parent=1 // pred_region
      %s327 = ssub.s32 128, 128
      %328 = vsyncadd [#allocation4], %s327
      %s330 = sshll.u32 [#allocation11], 4
      %s331 = int_to_ptr.vmem [resolvable:$true] %s330
      %333 = dma.vmem_to_hbm [thread:$0]  %s331, 128, %s5, [#allocation4]
    $region53: #{tpu_custom_call.1} parent=1 // pred_fallthru
      _
    // Predicated region
    $region54: #{tpu_custom_call.1} parent=1 // pred_check
      _
    $region55: #{tpu_custom_call.1} parent=1 // pred_check_branch
      %335 = sbr.rel (0) target = $region57
    $region56: #{tpu_custom_call.1} parent=1 // pred_region
      %336 = dma.done [#allocation4], 128
    $region57: #{tpu_custom_call.1} parent=1 // pred_fallthru
      _
    %337 = vsyncpa [#allocation3], 1
    %338 = vsyncpa [#allocation6], 1
    %339 = vsyncpa [#allocation9], 1
    %340 = vsyncpa [#allocation4], 1

</llo_original>
